<compile_context>
chip_gen: v7x
topology: tpu7x:2x2x1
jax: 0.10.0
libtpu: 0.0.40
codegen_flags: <defaults>
</compile_context>

<pallas_src>
import math

import jax
import jax.numpy as jnp
from jax import lax
from jax.experimental import pallas as pl
from jax.experimental.pallas import tpu as pltpu

_LANES = 128
# ~4 MiB per input per grid step on the wire (dtype-scaled row count).
_TARGET_BLOCK_BYTES = 4 * 1024 * 1024
# In-kernel sub-chunk so elementwise f32 temporaries stay ~0.5 MiB.
_INNER_ROWS = 1024
# 2 inputs x 2 pipeline buffers x 4 MiB + small temporaries ~= 18-19 MiB:
# above v5e's 16 MiB default scoped VMEM, well under v7x's 64 MiB physical.
_VMEM_LIMIT_BYTES = 40 * 1024 * 1024


def _cdiv(a, b):
    return -(-a // b)


def _round_up(a, b):
    return _cdiv(a, b) * b


def mse_loss_pallas(pred, target):
    """Mean squared error computed by a Pallas streaming-reduction kernel."""
    if pred.shape != target.shape:
        raise ValueError("pred/target shape mismatch")

    n = math.prod(pred.shape)
    if n == 0:
        return jnp.float32(0.0)

    itemsizes = (jnp.dtype(pred.dtype).itemsize, jnp.dtype(target.dtype).itemsize)
    # Sublane granularity required by the most tightly packed input dtype
    # (f32 -> 8, bf16 -> 16, int8/fp8 -> 32).
    sublane = max(8, 32 // max(min(itemsizes), 1))

    pred_flat = pred.reshape(-1)
    target_flat = target.reshape(-1)
    if n % _LANES == 0:
        rows = n // _LANES  # free reshape, no host copy
    else:
        # TODO(synk): truly ragged sizes (n % 128 != 0) still take one host-side
        # pad pass; 128-aligned tensors (the realistic detection case) never pad.
        rows = _round_up(_cdiv(n, _LANES), sublane)
        pad = rows * _LANES - n  # identical zero pad on both -> contributes 0
        pred_flat = jnp.pad(pred_flat, (0, pad))
        target_flat = jnp.pad(target_flat, (0, pad))
    p2d = pred_flat.reshape(rows, _LANES)
    t2d = target_flat.reshape(rows, _LANES)

    # Dtype-scaled block rows: 8192 for f32, 16384 for bf16 (~4 MiB / input).
    max_rows = _round_up(
        max(_TARGET_BLOCK_BYTES // (_LANES * max(itemsizes)), sublane), sublane)
    block_rows = min(max_rows, _round_up(rows, sublane))

    num_blocks = _cdiv(rows, block_rows)
    # Always expose two independent chunks when there are >=2 blocks so v7x's
    # two TensorCores can both work the "parallel" axis; on single-TC chips the
    # second chunk just adds one init/flush (cold path).
    num_chunks = 2 if num_blocks >= 2 else 1
    steps = _cdiv(num_blocks, num_chunks)
    has_overhang = num_chunks * steps != num_blocks
    # Partial last block and/or overhang grid steps are masked in-kernel
    # (no host-side padding to full blocks).
    needs_mask = (rows % block_rows != 0) or has_overhang

    def kernel(p_ref, t_ref, o_ref):
        s = pl.program_id(1)

        @pl.when(s == 0)
        def _init():
            o_ref[...] = jnp.zeros_like(o_ref)

        if needs_mask:
            blk = pl.program_id(0) * steps + s

        part = jnp.zeros((8, _LANES), jnp.float32)
        # Sub-chunk the block: DMA tile stays ~4 MiB/input, elementwise f32
        # temporaries stay ~0.5 MiB each.
        for off in range(0, block_rows, _INNER_ROWS):
            rows_c = min(_INNER_ROWS, block_rows - off)
            p = p_ref[pl.ds(off, rows_c), :].astype(jnp.float32)
            t = t_ref[pl.ds(off, rows_c), :].astype(jnp.float32)
            d = p - t
            sq = d * d
            if needs_mask:
                row_ids = blk * block_rows + off + lax.broadcasted_iota(
                    jnp.int32, (rows_c, _LANES), 0)
                sq = jnp.where(row_ids < rows, sq, 0.0)
            # (rows_c//8, 8, 128) keeps the (8,128) minor dims -> pure VPU adds.
            part = part + jnp.sum(sq.reshape(rows_c // 8, 8, _LANES), axis=0)

        # Single (8,128) accumulator update per grid step; the output block is
        # resident across the "arbitrary" axis.
        o_ref[...] += part

    if has_overhang:
        # Overhang steps re-map to the last real block: the block index equals
        # the previous step's, so Pallas skips the DMA; contribution is masked.
        def in_index(p, s):
            return (jnp.minimum(p * steps + s, num_blocks - 1), 0)
    else:
        def in_index(p, s):
            return (p * steps + s, 0)

    in_spec = pl.BlockSpec((block_rows, _LANES), in_index)

    partials = pl.pallas_call(
        kernel,
        out_shape=jax.ShapeDtypeStruct((num_chunks, 8, _LANES), jnp.float32),
        grid_spec=pltpu.PrefetchScalarGridSpec(
            num_scalar_prefetch=0,
            grid=(num_chunks, steps),
            in_specs=[in_spec, in_spec],
            # Lane-dense (8,128) partial per chunk; the final cross-lane reduce
            # is a tiny jnp.sum in the wrapper.
            out_specs=pl.BlockSpec((None, 8, _LANES), lambda p, s: (p, 0, 0)),
        ),
        compiler_params=pltpu.CompilerParams(
            dimension_semantics=("parallel", "arbitrary"),
            vmem_limit_bytes=_VMEM_LIMIT_BYTES,
        ),
    )(p2d, t2d)

    return (jnp.sum(partials) / jnp.float32(n)).astype(jnp.float32)


def pred_loss_fn(input_data, pred):
    """Concrete prediction loss (MSE) used as MultiLoss.pred_loss."""
    target = input_data["target"]
    loss = mse_loss_pallas(pred, target)
    return {"loss": loss, "stats": {"pred_loss": loss}}


def multi_loss_forward(input_data, output, pred_loss=pred_loss_fn):
    """Exact semantics of MultiLoss.forward (dict plumbing is host-side)."""
    loss = jnp.float32(0.0)
    stats = {}
    if pred_loss is not None:
        flow = pred_loss(input_data, output["pred"])
        loss = loss + flow["loss"]
        stats = {**stats, **flow["stats"]}
    stats = {**stats, "loss": loss}
    return {"loss": loss, "stats": stats}


if __name__ == "__main__":
    key = jax.random.PRNGKey(0)
    k_pred, k_tgt = jax.random.split(key)

    # Small detection-style shapes: batch=2, channels=4, spatial=16x16 (NCHW).
    pred = jax.random.normal(k_pred, (2, 4, 16, 16), dtype=jnp.float32)
    target = jax.random.normal(k_tgt, (2, 4, 16, 16), dtype=jnp.float32)

    input_data = {"target": target}
    output = {"pred": pred}

    result = multi_loss_forward(input_data, output)
    jax.block_until_ready(result["loss"])

    ref = jnp.mean((pred - target) ** 2)
    assert jnp.allclose(result["loss"], ref, atol=1e-5, rtol=1e-5), (
        result["loss"], ref)
    assert jnp.allclose(result["stats"]["loss"], result["loss"])
    assert jnp.allclose(result["stats"]["pred_loss"], result["loss"])

    # bf16: native-dtype streaming + in-kernel sub-chunk loop.
    kb1, kb2 = jax.random.split(jax.random.PRNGKey(1))
    pb = jax.random.normal(kb1, (8, 16, 64, 128), dtype=jnp.bfloat16)
    tb = jax.random.normal(kb2, (8, 16, 64, 128), dtype=jnp.bfloat16)
    got_b = mse_loss_pallas(pb, tb)
    jax.block_until_ready(got_b)
    ref_b = jnp.mean((pb.astype(jnp.float32) - tb.astype(jnp.float32)) ** 2)
    assert jnp.allclose(got_b, ref_b, atol=1e-3, rtol=1e-3), (got_b, ref_b)

    # f32 multi-block: 3 real blocks on a 2x2 (chunk, step) grid — exercises
    # two chunks, the partial last block and the masked overhang step, all
    # without any host-side padding.
    km1, km2 = jax.random.split(jax.random.PRNGKey(2))
    pm = jax.random.normal(km1, (20000, 128), dtype=jnp.float32)
    tm = jax.random.normal(km2, (20000, 128), dtype=jnp.float32)
    got_m = mse_loss_pallas(pm, tm)
    jax.block_until_ready(got_m)
    ref_m = jnp.mean((pm - tm) ** 2)
    assert jnp.allclose(got_m, ref_m, atol=1e-5, rtol=1e-4), (got_m, ref_m)

    # Ragged size (numel % 128 != 0) -> host-pad fallback path.
    kr1, kr2 = jax.random.split(jax.random.PRNGKey(3))
    pr = jax.random.normal(kr1, (3, 5, 7, 11), dtype=jnp.float32)
    tr = jax.random.normal(kr2, (3, 5, 7, 11), dtype=jnp.float32)
    got_r = mse_loss_pallas(pr, tr)
    jax.block_until_ready(got_r)
    ref_r = jnp.mean((pr - tr) ** 2)
    assert jnp.allclose(got_r, ref_r, atol=1e-5, rtol=1e-5), (got_r, ref_r)

    print("KERNEL_OK")
</pallas_src>

<mosaic_0001>
module attributes {stable_mosaic.version = 11 : i64} {
  func.func @kernel(%arg0: i32, %arg1: i32, %arg2: memref<16x128xf32, #tpu.memory_space<vmem>>, %arg3: memref<16x128xf32, #tpu.memory_space<vmem>>, %arg4: memref<1x8x128xf32, #tpu.memory_space<vmem>>) attributes {dimension_semantics = [#tpu.dimension_semantics<parallel>, #tpu.dimension_semantics<arbitrary>], iteration_bounds = array<i64: 1, 1>, scalar_prefetch = 0 : i64, scratch_operands = 0 : i64, tpu.core_type = #tpu.core_type<tc>, window_params = [{transform_indices = @transform_0, window_bounds = array<i64: 16, 128>}, {transform_indices = @transform_1, window_bounds = array<i64: 16, 128>}, {transform_indices = @transform_2, window_bounds = array<i64: 1, 8, 128>}]} {
    %c0_i32 = arith.constant 0 : i32
    %0 = arith.cmpi eq, %arg1, %c0_i32 : i32
    %1 = arith.extui %0 : i1 to i32
    %c0_i32_0 = arith.constant 0 : i32
    %2 = arith.cmpi ne, %1, %c0_i32_0 : i32
    scf.if %2 {
      %cst_11 = arith.constant 0.000000e+00 : f32
      %17 = vector.broadcast %cst_11 : f32 to vector<8x128xf32>
      %c0_12 = arith.constant 0 : index
      %c0_13 = arith.constant 0 : index
      %c0_14 = arith.constant 0 : index
      %18 = vector.load %arg4[%c0_12, %c0_13, %c0_14] : memref<1x8x128xf32, #tpu.memory_space<vmem>>, vector<1x8x128xf32>
      %19 = vector.shape_cast %18 : vector<1x8x128xf32> to vector<8x128xf32>
      %20 = vector.shape_cast %17 : vector<8x128xf32> to vector<1x8x128xf32>
      tpu.vector_store %arg4[%c0_12, %c0_13, %c0_14], %20 {strides = array<i32>} : memref<1x8x128xf32, #tpu.memory_space<vmem>>, vector<1x8x128xf32>,
    } else {
    }
    %cst = arith.constant 0.000000e+00 : f32
    %3 = vector.broadcast %cst : f32 to vector<8x128xf32>
    %c0 = arith.constant 0 : index
    %c0_1 = arith.constant 0 : index
    %4 = vector.load %arg2[%c0, %c0_1] : memref<16x128xf32, #tpu.memory_space<vmem>>, vector<16x128xf32>
    %c0_2 = arith.constant 0 : index
    %c0_3 = arith.constant 0 : index
    %5 = vector.load %arg3[%c0_2, %c0_3] : memref<16x128xf32, #tpu.memory_space<vmem>>, vector<16x128xf32>
    %6 = arith.subf %4, %5 : vector<16x128xf32>
    %7 = arith.mulf %6, %6 : vector<16x128xf32>
    %8 = vector.shape_cast %7 : vector<16x128xf32> to vector<2x8x128xf32>
    %cst_4 = arith.constant dense<0.000000e+00> : vector<8x128xf32>
    %9 = vector.multi_reduction <add>, %8, %cst_4 [0] : vector<2x8x128xf32> to vector<8x128xf32>
    %10 = arith.addf %3, %9 : vector<8x128xf32>
    %c0_5 = arith.constant 0 : index
    %c0_6 = arith.constant 0 : index
    %c0_7 = arith.constant 0 : index
    %11 = vector.load %arg4[%c0_5, %c0_6, %c0_7] : memref<1x8x128xf32, #tpu.memory_space<vmem>>, vector<1x8x128xf32>
    %12 = vector.shape_cast %11 : vector<1x8x128xf32> to vector<8x128xf32>
    %13 = arith.addf %12, %10 : vector<8x128xf32>
    %c0_8 = arith.constant 0 : index
    %c0_9 = arith.constant 0 : index
    %c0_10 = arith.constant 0 : index
    %14 = vector.load %arg4[%c0_8, %c0_9, %c0_10] : memref<1x8x128xf32, #tpu.memory_space<vmem>>, vector<1x8x128xf32>
    %15 = vector.shape_cast %14 : vector<1x8x128xf32> to vector<8x128xf32>
    %16 = vector.shape_cast %13 : vector<8x128xf32> to vector<1x8x128xf32>
    tpu.vector_store %arg4[%c0_8, %c0_9, %c0_10], %16 {strides = array<i32>} : memref<1x8x128xf32, #tpu.memory_space<vmem>>, vector<1x8x128xf32>,
    return
  }
  func.func @transform_0(%arg0: i32, %arg1: i32) -> (i32, i32) {
    %c1_i32 = arith.constant 1 : i32
    %0 = arith.muli %arg0, %c1_i32 : i32
    %1 = arith.addi %0, %arg1 : i32
    %c0_i32 = arith.constant 0 : i32
    %c0_i32_0 = arith.constant 0 : i32
    return %1, %c0_i32 : i32, i32
  }
  func.func @transform_1(%arg0: i32, %arg1: i32) -> (i32, i32) {
    %c1_i32 = arith.constant 1 : i32
    %0 = arith.muli %arg0, %c1_i32 : i32
    %1 = arith.addi %0, %arg1 : i32
    %c0_i32 = arith.constant 0 : i32
    %c0_i32_0 = arith.constant 0 : i32
    return %1, %c0_i32 : i32, i32
  }
  func.func @transform_2(%arg0: i32, %arg1: i32) -> (i32, i32, i32) {
    %c0_i32 = arith.constant 0 : i32
    %c0_i32_0 = arith.constant 0 : i32
    %c0_i32_1 = arith.constant 0 : i32
    return %arg0, %c0_i32, %c0_i32_0 : i32, i32, i32
  }
}

</mosaic_0001>

<llo_original>
// kernel: tpu_custom_call.1
$region0: #{tpu_custom_call.1}
  #allocation0 [shape = 'u32[]', space=smem, size = 0x4, offset = 0x4, fixed_abs, tag = 'smem constant byte address 0x4 - core index']
  #allocation1 [shape = 'u32[144,128]{1,0:T(1,128)}', space=vmem, size = 0x12000, scoped, tag = 'internal scratch']
  %s0 = inlined_call_operand.hbm [shape: f32[16,128], index: 0, kind: input, shape index: {}]
  %s1 = inlined_call_operand.hbm [shape: f32[16,128], index: 1, kind: input, shape index: {}]
  %s2 = inlined_call_operand.hbm [shape: f32[1,8,128], index: 2, kind: output, shape index: {}]
  %s3 = sld [smem:[#allocation0]]
  $region30: #{tpu_custom_call.1} parent=0
    _
  %s5 = ssub.s32 1, %s3
  %s6 = scalar_select 0, %s5, %s3
  $region1: #{tpu_custom_call.1} parent=0
    #allocation2 [shape = 'u8[8192]{0}', space=vmem, size = 0x2000, scoped, tag = 'input window, operand 0, single buffered']
    #allocation3 [shape = 's32[1]{0}', space=sflag, size = 0x4, scoped, tag = 'scoped memory for tpu_custom_call.1']
    #allocation4 [shape = 's32[1]{0}', space=sflag, size = 0x4, scoped, tag = 'scoped memory for tpu_custom_call.1']
    #allocation5 [shape = 'u8[8192]{0}', space=vmem, size = 0x2000, scoped, tag = 'input window, operand 1, single buffered']
    #allocation6 [shape = 's32[1]{0}', space=sflag, size = 0x4, scoped, tag = 'scoped memory for tpu_custom_call.1']
    #allocation7 [shape = 'u8[4096]{0}', space=vmem, size = 0x1000, scoped, tag = 'output window, operand 0, single buffered']
    %7 = vsyncpa [#allocation3], 0
    %8 = vsyncpa [#allocation6], 0
    %9 = vsyncpa [#allocation4], 0
    // Predicated region
    $region2: #{tpu_custom_call.1} parent=1 // pred_check
      _
    $region3: #{tpu_custom_call.1} parent=1 // pred_check_branch
      %11 = sbr.rel (0) target = $region5
    $region4: #{tpu_custom_call.1} parent=1 // pred_region
      %s12 = sadd.s32 0, 0
      %s13 = smul.u32 2, %s12
      %s15 = ssub.s32 256, 256
      %16 = vsyncadd [#allocation3], %s15
      %s17 = smul.addr %s13, 128
      %s18 = scalar_lea.hbm %s0, %s17
      %s19 = sshll.u32 [#allocation2], 4
      %s20 = int_to_ptr.vmem [resolvable:$true] %s19
      %25 = dma.hbm_to_vmem [thread:$0]  %s18, 256, %s20, [#allocation3], 128, 128, 8
    $region5: #{tpu_custom_call.1} parent=1 // pred_fallthru
      _
    // Predicated region
    $region6: #{tpu_custom_call.1} parent=1 // pred_check
      _
    $region7: #{tpu_custom_call.1} parent=1 // pred_check_branch
      %27 = sbr.rel (0) target = $region9
    $region8: #{tpu_custom_call.1} parent=1 // pred_region
      %s28 = sadd.s32 0, 0
      %s29 = smul.u32 2, %s28
      %s31 = ssub.s32 256, 256
      %32 = vsyncadd [#allocation6], %s31
      %s33 = smul.addr %s29, 128
      %s34 = scalar_lea.hbm %s1, %s33
      %s35 = sshll.u32 [#allocation5], 4
      %s36 = int_to_ptr.vmem [resolvable:$true] %s35
      %41 = dma.hbm_to_vmem [thread:$0]  %s34, 256, %s36, [#allocation6], 128, 128, 8
    $region9: #{tpu_custom_call.1} parent=1 // pred_fallthru
      _
    // Predicated region
    $region10: #{tpu_custom_call.1} parent=1 // pred_check
      _
    $region11: #{tpu_custom_call.1} parent=1 // pred_check_branch
      %43 = sbr.rel (0) target = $region13
    $region12: #{tpu_custom_call.1} parent=1 // pred_region
      %44 = dma.done [#allocation3], 256
    $region13: #{tpu_custom_call.1} parent=1 // pred_fallthru
      _
    // Predicated region
    $region14: #{tpu_custom_call.1} parent=1 // pred_check
      _
    $region15: #{tpu_custom_call.1} parent=1 // pred_check_branch
      %46 = sbr.rel (0) target = $region17
    $region16: #{tpu_custom_call.1} parent=1 // pred_region
      %47 = dma.done [#allocation6], 256
    $region17: #{tpu_custom_call.1} parent=1 // pred_fallthru
      _
    %s48 = sadd.s32 0, 0
    %s49 = smul.u32 2, %s48
    %s50 = sadd.s32 0, 0
    %s51 = smul.u32 2, %s50
    %p52 = scmp.eq.s32.totalorder 0, 0
    // Predicated region
    $region18: #{tpu_custom_call.1} parent=1 // pred_check
      %p53 = pneg %p52
    $region19: #{tpu_custom_call.1} parent=1 // pred_check_branch
      %55 = sbr.rel (%p53) target = $region21
    $region20: #{tpu_custom_call.1} parent=1 // pred_region
      %56 = vst [vmem:[#allocation7] sm:$0xff] 0.0
    $region21: #{tpu_custom_call.1} parent=1 // pred_fallthru
      _
    %v57 = vld [vmem:[#allocation2] sm:$0xff]
    %v58 = vld [vmem:[#allocation2 + $0x8] sm:$0xff]
    %v59 = vld [vmem:[#allocation5] sm:$0xff]
    %v60 = vld [vmem:[#allocation5 + $0x8] sm:$0xff]
    %v61 = vsub.f32 %v57, %v59
    %v62 = vsub.f32 %v58, %v60
    %v63 = vmul.f32 %v61, %v61
    %v64 = vmul.f32 %v62, %v62
    %v65 = vadd.f32 %v63, %v64
    %v66 = vadd.f32 %v65, 0.0
    %v67 = vld [vmem:[#allocation7] sm:$0xff]
    %v68 = vadd.f32 %v67, %v66
    %69 = vst [vmem:[#allocation7] sm:$0xff] %v68
    // Predicated region
    $region22: #{tpu_custom_call.1} parent=1 // pred_check
      _
    $region23: #{tpu_custom_call.1} parent=1 // pred_check_branch
      %71 = sbr.rel (0) target = $region25
    $region24: #{tpu_custom_call.1} parent=1 // pred_region
      %s73 = ssub.s32 128, 128
      %74 = vsyncadd [#allocation4], %s73
      %s76 = sshll.u32 [#allocation7], 4
      %s77 = int_to_ptr.vmem [resolvable:$true] %s76
      %79 = dma.vmem_to_hbm [thread:$0]  %s77, 128, %s2, [#allocation4]
    $region25: #{tpu_custom_call.1} parent=1 // pred_fallthru
      _
    // Predicated region
    $region26: #{tpu_custom_call.1} parent=1 // pred_check
      _
    $region27: #{tpu_custom_call.1} parent=1 // pred_check_branch
      %81 = sbr.rel (0) target = $region29
    $region28: #{tpu_custom_call.1} parent=1 // pred_region
      %82 = dma.done [#allocation4], 128
    $region29: #{tpu_custom_call.1} parent=1 // pred_fallthru
      _
    %83 = vsyncpa [#allocation3], 1
    %84 = vsyncpa [#allocation6], 1
    %85 = vsyncpa [#allocation4], 1

</llo_original>
